<compile_context>
chip_gen: v7x
topology: tpu7x:2x2x1
jax: 0.10.0
libtpu: 0.0.40
codegen_flags: <defaults>
</compile_context>

<pallas_src>
import functools

import jax
import jax.numpy as jnp
from jax.experimental import pallas as pl
from jax.experimental.pallas import tpu as pltpu

SUBLANE = 8


def _round_up(x, m):
    return ((x + m - 1) // m) * m


def tuning_net_kernel(x_ref, w1_ref, b1_ref, w2_ref, b2_ref, o_ref):
    # linear1: x @ W1 + b1   (bf16 MXU inputs, f32 accumulation)
    x = x_ref[...].astype(jnp.bfloat16)      # in-kernel cast: free VPU work under DMA slack,
    h = jnp.dot(x, w1_ref[...],              # avoids an extra wrapper pass over x in HBM
                preferred_element_type=jnp.float32)
    h = jnp.maximum(h + b1_ref[...], 0.0)    # bias + ReLU in f32 on the VPU
    # linear2: h @ W2 + b2
    logits = jnp.dot(h.astype(jnp.bfloat16), w2_ref[...],
                     preferred_element_type=jnp.float32)
    logits = logits + b2_ref[...]
    # softmax over dim=1 (last axis), numerically stable
    m = jnp.max(logits, axis=-1, keepdims=True)
    e = jnp.exp(logits - m)
    denom = jnp.sum(e, axis=-1, keepdims=True)
    # approx reciprocal rides the EUP slot (effectively free)
    o_ref[...] = (e * pl.reciprocal(denom, approx=True)).astype(o_ref.dtype)


def _choose_tb(B, tb):
    """Batch tile: big enough to amortize per-step overhead, but >= 2 grid steps
    when the batch allows (v7x megacore), and a multiple of 8 (f32 sublane)."""
    if B <= SUBLANE:
        return B                                   # block == full batch dim (legal)
    half = _round_up((B + 1) // 2, SUBLANE)        # keep at least 2 steps
    return max(SUBLANE, min(int(tb), half))


@functools.partial(jax.jit, static_argnames=("tb",))
def tuning_net_forward(x, w1, b1, w2, b2, *, tb=1024):
    B, D_in = x.shape
    H = w1.shape[1]
    D_out = w2.shape[1]

    TB = _choose_tb(B, tb)
    nb = pl.cdiv(B, TB)          # ragged last block handled by Pallas (masked store)

    w1 = w1.astype(jnp.bfloat16)
    w2 = w2.astype(jnp.bfloat16)
    b1 = b1.reshape(1, H).astype(jnp.float32)
    b2 = b2.reshape(1, D_out).astype(jnp.float32)

    flops = 2 * B * (D_in * H + H * D_out)
    bytes_accessed = (x.size * x.dtype.itemsize + w1.size * 2 + b1.size * 4
                      + w2.size * 2 + b2.size * 4 + B * D_out * 4)

    out = pl.pallas_call(
        tuning_net_kernel,
        out_shape=jax.ShapeDtypeStruct((B, D_out), jnp.float32),
        grid_spec=pltpu.PrefetchScalarGridSpec(
            num_scalar_prefetch=0,
            grid=(nb,),
            in_specs=[
                pl.BlockSpec((TB, D_in), lambda i: (i, 0)),     # streamed per tile
                pl.BlockSpec((D_in, H), lambda i: (0, 0)),      # resident weights
                pl.BlockSpec((1, H), lambda i: (0, 0)),
                pl.BlockSpec((H, D_out), lambda i: (0, 0)),
                pl.BlockSpec((1, D_out), lambda i: (0, 0)),
            ],
            out_specs=pl.BlockSpec((TB, D_out), lambda i: (i, 0)),
        ),
        compiler_params=pltpu.CompilerParams(
            dimension_semantics=("parallel",),      # megacore sharding on v7x
            vmem_limit_bytes=32 * 1024 * 1024,      # safe on v7x's 64 MiB VMEM
        ),
        cost_estimate=pl.CostEstimate(
            flops=flops,
            transcendentals=B * D_out,
            bytes_accessed=bytes_accessed,
        ),
    )(x, w1, b1, w2, b2)

    return out


def init_linear_params(key, fan_in, fan_out):
    # Deterministic init mimicking torch.nn.Linear default (uniform +/- 1/sqrt(fan_in)).
    kw, kb = jax.random.split(key)
    bound = 1.0 / jnp.sqrt(jnp.float32(fan_in))
    # Stored pre-transposed: [fan_in, fan_out]
    w = jax.random.uniform(kw, (fan_in, fan_out), jnp.float32, -bound, bound)
    b = jax.random.uniform(kb, (1, fan_out), jnp.float32, -bound, bound)
    return w, b


def _reference(x, w1, b1, w2, b2):
    h = jnp.maximum(x @ w1 + b1, 0.0)
    return jax.nn.softmax(h @ w2 + b2, axis=1)


if __name__ == "__main__":
    key = jax.random.PRNGKey(0)
    k_x, k_l1, k_l2, k_x2, k_x3 = jax.random.split(key, 5)

    D_in, H, D_out = 32, 64, 16
    w1, b1 = init_linear_params(k_l1, D_in, H)
    w2, b2 = init_linear_params(k_l2, H, D_out)

    # Tiny batch (block == full batch dim, single grid step).
    B = 4
    x = jax.random.normal(k_x, (B, D_in), jnp.float32)
    y = jax.block_until_ready(tuning_net_forward(x, w1, b1, w2, b2))
    y_ref = _reference(x, w1, b1, w2, b2)
    assert y.shape == (B, D_out)
    assert jnp.allclose(y, y_ref, atol=1e-2, rtol=1e-2), "small-batch mismatch"
    assert jnp.allclose(jnp.sum(y, axis=1), 1.0, atol=1e-2)

    # Exact-multiple batch (2 grid steps, resident weights reused).
    B2 = 128
    x2 = jax.random.normal(k_x2, (B2, D_in), jnp.float32)
    y2 = jax.block_until_ready(tuning_net_forward(x2, w1, b1, w2, b2))
    y2_ref = _reference(x2, w1, b1, w2, b2)
    assert y2.shape == (B2, D_out)
    assert jnp.allclose(y2, y2_ref, atol=1e-2, rtol=1e-2), "multi-tile mismatch"
    assert jnp.allclose(jnp.sum(y2, axis=1), 1.0, atol=1e-2)

    # Ragged batch (last block partially masked by Pallas, no wrapper padding pass).
    B3 = 200
    x3 = jax.random.normal(k_x3, (B3, D_in), jnp.float32)
    y3 = jax.block_until_ready(tuning_net_forward(x3, w1, b1, w2, b2))
    y3_ref = _reference(x3, w1, b1, w2, b2)
    assert y3.shape == (B3, D_out)
    assert jnp.allclose(y3, y3_ref, atol=1e-2, rtol=1e-2), "ragged-batch mismatch"
    assert jnp.allclose(jnp.sum(y3, axis=1), 1.0, atol=1e-2)

    print("KERNEL_OK")
</pallas_src>

<mosaic_0001>
module attributes {stable_mosaic.version = 11 : i64} {
  func.func @tuning_net_kernel(%arg0: i32, %arg1: memref<4x32xf32, #tpu.memory_space<vmem>>, %arg2: memref<32x64xbf16, #tpu.memory_space<vmem>>, %arg3: memref<1x64xf32, #tpu.memory_space<vmem>>, %arg4: memref<64x16xbf16, #tpu.memory_space<vmem>>, %arg5: memref<1x16xf32, #tpu.memory_space<vmem>>, %arg6: memref<4x16xf32, #tpu.memory_space<vmem>>) attributes {dimension_semantics = [#tpu.dimension_semantics<parallel>], iteration_bounds = array<i64: 1>, scalar_prefetch = 0 : i64, scratch_operands = 0 : i64, tpu.core_type = #tpu.core_type<tc>, window_params = [{transform_indices = @transform_0, window_bounds = array<i64: 4, 32>}, {pipeline_mode = #tpu.pipeline_mode<synchronous>, transform_indices = @transform_1, window_bounds = array<i64: 32, 64>}, {pipeline_mode = #tpu.pipeline_mode<synchronous>, transform_indices = @transform_2, window_bounds = array<i64: 1, 64>}, {pipeline_mode = #tpu.pipeline_mode<synchronous>, transform_indices = @transform_3, window_bounds = array<i64: 64, 16>}, {pipeline_mode = #tpu.pipeline_mode<synchronous>, transform_indices = @transform_4, window_bounds = array<i64: 1, 16>}, {transform_indices = @transform_5, window_bounds = array<i64: 4, 16>}]} {
    %c0 = arith.constant 0 : index
    %c0_0 = arith.constant 0 : index
    %0 = vector.load %arg1[%c0, %c0_0] : memref<4x32xf32, #tpu.memory_space<vmem>>, vector<4x32xf32>
    %1 = arith.truncf %0 : vector<4x32xf32> to vector<4x32xbf16>
    %c0_1 = arith.constant 0 : index
    %c0_2 = arith.constant 0 : index
    %2 = vector.load %arg2[%c0_1, %c0_2] : memref<32x64xbf16, #tpu.memory_space<vmem>>, vector<32x64xbf16>
    %cst = arith.constant dense<0.000000e+00> : vector<4x64xf32>
    %3 = tpu.matmul %1, %2, %cst {dimension_numbers = #tpu.dot_dimension_numbers<[1], [0], [0], [1], [0, 0, 1, 1], [], []>} : vector<4x32xbf16>, vector<32x64xbf16>, vector<4x64xf32> -> vector<4x64xf32>
    %c0_3 = arith.constant 0 : index
    %c0_4 = arith.constant 0 : index
    %4 = vector.load %arg3[%c0_3, %c0_4] : memref<1x64xf32, #tpu.memory_space<vmem>>, vector<1x64xf32>
    %5 = vector.broadcast %4 : vector<1x64xf32> to vector<4x64xf32>
    %6 = arith.addf %3, %5 : vector<4x64xf32>
    %cst_5 = arith.constant 0.000000e+00 : f32
    %7 = vector.broadcast %cst_5 : f32 to vector<4x64xf32>
    %8 = arith.maximumf %6, %7 : vector<4x64xf32>
    %9 = arith.truncf %8 : vector<4x64xf32> to vector<4x64xbf16>
    %c0_6 = arith.constant 0 : index
    %c0_7 = arith.constant 0 : index
    %10 = vector.load %arg4[%c0_6, %c0_7] : memref<64x16xbf16, #tpu.memory_space<vmem>>, vector<64x16xbf16>
    %cst_8 = arith.constant dense<0.000000e+00> : vector<4x16xf32>
    %11 = tpu.matmul %9, %10, %cst_8 {dimension_numbers = #tpu.dot_dimension_numbers<[1], [0], [0], [1], [0, 0, 1, 1], [], []>} : vector<4x64xbf16>, vector<64x16xbf16>, vector<4x16xf32> -> vector<4x16xf32>
    %c0_9 = arith.constant 0 : index
    %c0_10 = arith.constant 0 : index
    %12 = vector.load %arg5[%c0_9, %c0_10] : memref<1x16xf32, #tpu.memory_space<vmem>>, vector<1x16xf32>
    %13 = vector.broadcast %12 : vector<1x16xf32> to vector<4x16xf32>
    %14 = arith.addf %11, %13 : vector<4x16xf32>
    %cst_11 = arith.constant dense<0xFF800000> : vector<4xf32>
    %15 = vector.multi_reduction <maximumf>, %14, %cst_11 [1] : vector<4x16xf32> to vector<4xf32>
    %16 = vector.shape_cast %15 : vector<4xf32> to vector<4x1xf32>
    %17 = vector.broadcast %16 : vector<4x1xf32> to vector<4x16xf32>
    %18 = arith.subf %14, %17 : vector<4x16xf32>
    %19 = math.exp %18 : vector<4x16xf32>
    %cst_12 = arith.constant dense<0.000000e+00> : vector<4xf32>
    %20 = vector.multi_reduction <add>, %19, %cst_12 [1] : vector<4x16xf32> to vector<4xf32>
    %21 = vector.shape_cast %20 : vector<4xf32> to vector<4x1xf32>
    %22 = tpu.reciprocal %21 {approx = true} : vector<4x1xf32> -> vector<4x1xf32>
    %23 = vector.broadcast %22 : vector<4x1xf32> to vector<4x16xf32>
    %24 = arith.mulf %19, %23 : vector<4x16xf32>
    %c0_13 = arith.constant 0 : index
    %c0_14 = arith.constant 0 : index
    %25 = vector.load %arg6[%c0_13, %c0_14] : memref<4x16xf32, #tpu.memory_space<vmem>>, vector<4x16xf32>
    tpu.vector_store %arg6[%c0_13, %c0_14], %24 {strides = array<i32>} : memref<4x16xf32, #tpu.memory_space<vmem>>, vector<4x16xf32>,
    return
  }
  func.func @transform_0(%arg0: i32) -> (i32, i32) {
    %c0_i32 = arith.constant 0 : i32
    %c0_i32_0 = arith.constant 0 : i32
    return %arg0, %c0_i32 : i32, i32
  }
  func.func @transform_1(%arg0: i32) -> (i32, i32) {
    %c0_i32 = arith.constant 0 : i32
    %c0_i32_0 = arith.constant 0 : i32
    %c0_i32_1 = arith.constant 0 : i32
    return %c0_i32, %c0_i32_0 : i32, i32
  }
  func.func @transform_2(%arg0: i32) -> (i32, i32) {
    %c0_i32 = arith.constant 0 : i32
    %c0_i32_0 = arith.constant 0 : i32
    %c0_i32_1 = arith.constant 0 : i32
    return %c0_i32, %c0_i32_0 : i32, i32
  }
  func.func @transform_3(%arg0: i32) -> (i32, i32) {
    %c0_i32 = arith.constant 0 : i32
    %c0_i32_0 = arith.constant 0 : i32
    %c0_i32_1 = arith.constant 0 : i32
    return %c0_i32, %c0_i32_0 : i32, i32
  }
  func.func @transform_4(%arg0: i32) -> (i32, i32) {
    %c0_i32 = arith.constant 0 : i32
    %c0_i32_0 = arith.constant 0 : i32
    %c0_i32_1 = arith.constant 0 : i32
    return %c0_i32, %c0_i32_0 : i32, i32
  }
  func.func @transform_5(%arg0: i32) -> (i32, i32) {
    %c0_i32 = arith.constant 0 : i32
    %c0_i32_0 = arith.constant 0 : i32
    return %arg0, %c0_i32 : i32, i32
  }
}

</mosaic_0001>

<llo_original>
// kernel: tuning_net_forward.1
$region0: #{tuning_net_forward.1}
  #allocation0 [shape = 'u32[]', space=smem, size = 0x4, offset = 0x4, fixed_abs, tag = 'smem constant byte address 0x4 - core index']
  #allocation1 [shape = 'u32[144,128]{1,0:T(1,128)}', space=vmem, size = 0x12000, scoped, tag = 'internal scratch']
  %s0 = inlined_call_operand.vmem [shape: f32[4,32], index: 0, kind: input, shape index: {}]
  %s1 = inlined_call_operand.vmem [shape: bf16[32,64], index: 1, kind: input, shape index: {}]
  %s2 = inlined_call_operand.vmem [shape: f32[1,64], index: 2, kind: input, shape index: {}]
  %s3 = inlined_call_operand.vmem [shape: bf16[64,16], index: 3, kind: input, shape index: {}]
  %s4 = inlined_call_operand.vmem [shape: f32[1,16], index: 4, kind: input, shape index: {}]
  %s5 = inlined_call_operand.hbm [shape: f32[4,16], index: 5, kind: output, shape index: {}]
  %s6 = sld [smem:[#allocation0]]
  $region30: #{tuning_net_forward.1} parent=0
    _
  %s8 = ssub.s32 1, %s6
  %s9 = scalar_select 0, %s8, %s6
  $region1: #{tuning_net_forward.1} parent=0
    #allocation2 [shape = 'u8[2048]{0}', space=vmem, size = 0x800, scoped, tag = 'output window, operand 0, single buffered']
    #allocation3 [shape = 's32[1]{0}', space=sflag, size = 0x4, scoped, tag = 'scoped memory for tuning_net_forward.1']
    %10 = vsyncpa [#allocation3], 0
    // Predicated region
    $region2: #{tuning_net_forward.1} parent=1 // pred_check
      _
    $region3: #{tuning_net_forward.1} parent=1 // pred_check_branch
      %12 = sbr.rel (0) target = $region5
    $region4: #{tuning_net_forward.1} parent=1 // pred_region
      _
    $region5: #{tuning_net_forward.1} parent=1 // pred_fallthru
      _
    // Predicated region
    $region6: #{tuning_net_forward.1} parent=1 // pred_check
      _
    $region7: #{tuning_net_forward.1} parent=1 // pred_check_branch
      %14 = sbr.rel (0) target = $region9
    $region8: #{tuning_net_forward.1} parent=1 // pred_region
      _
    $region9: #{tuning_net_forward.1} parent=1 // pred_fallthru
      _
    // Predicated region
    $region10: #{tuning_net_forward.1} parent=1 // pred_check
      _
    $region11: #{tuning_net_forward.1} parent=1 // pred_check_branch
      %16 = sbr.rel (0) target = $region13
    $region12: #{tuning_net_forward.1} parent=1 // pred_region
      _
    $region13: #{tuning_net_forward.1} parent=1 // pred_fallthru
      _
    // Predicated region
    $region14: #{tuning_net_forward.1} parent=1 // pred_check
      _
    $region15: #{tuning_net_forward.1} parent=1 // pred_check_branch
      %18 = sbr.rel (0) target = $region17
    $region16: #{tuning_net_forward.1} parent=1 // pred_region
      _
    $region17: #{tuning_net_forward.1} parent=1 // pred_fallthru
      _
    // Predicated region
    $region18: #{tuning_net_forward.1} parent=1 // pred_check
      _
    $region19: #{tuning_net_forward.1} parent=1 // pred_check_branch
      %20 = sbr.rel (0) target = $region21
    $region20: #{tuning_net_forward.1} parent=1 // pred_region
      _
    $region21: #{tuning_net_forward.1} parent=1 // pred_fallthru
      _
    %v22 = vld [vmem:[%s0] sm:$0xf]
    %v23 = vpack.c.bf16 %v22, %v22
    %v24 = vld [vmem:[%s1] sm:$0xf]
    %v25 = vld [vmem:[%s1 + $0x4] sm:$0xf]
    %v26 = vld [vmem:[%s1 + $0x8] sm:$0xf]
    %v27 = vld [vmem:[%s1 + $0xc] sm:$0xf]
    %v28 = vld [vmem:[%s2] sm:$0x1]
    %v30 = vlaneseq
    %v31 = vshrl.u32 %v30, 7
    %v32 = vsub.s32 0, %v31
    %v33 = vrot.slane %v28, %v32
    %v39 = vunpack.c.l.b16 %v24
    %v40 = vunpack.c.l.b16 %v25
    %v41 = vunpack.c.l.b16 %v26
    %v42 = vunpack.c.l.b16 %v27
    %v43 = vpack.c.b16 %v40, %v39
    %v44 = vpack.c.b16 %v42, %v41
    %vm47 = vcmask 261120
    %v49 = vsel %vm47, %v23, 0
    %51 = vmatprep.subr.bf16.mxu0 0
    %52 = vmatpush1.bf16.msra.mxu0 %v43
    %53 = vmatprep.subr.bf16.mxu0 0
    %54 = vmatpush1.bf16.msra.mxu0 %v44
    %55 = vmatprep.subr.bf16.mxu0 0
    %56 = vmatpush1.bf16.msra.mxu0 0
    %57 = vmatprep.subr.bf16.mxu0 0
    %58 = vmatpush1.bf16.msra.mxu0 0
    %59 = vmatprep.subr.bf16.mxu0 0
    %60 = vmatpush1.bf16.msra.mxu0 0
    %61 = vmatprep.subr.bf16.mxu0 0
    %62 = vmatpush1.bf16.msra.mxu0 0
    %63 = vmatprep.subr.bf16.mxu0 0
    %64 = vmatpush1.bf16.msra.mxu0 0
    %65 = vmatprep.subr.bf16.mxu0 0
    %66 = vmatpush1.bf16.msra.mxu0 0
    %67 = vmatprep.subr.bf16.mxu0 0
    %68 = vmatpush1.bf16.msra.mxu0 0
    %69 = vmatprep.subr.bf16.mxu0 0
    %70 = vmatpush1.bf16.msra.mxu0 0
    %71 = vmatprep.subr.bf16.mxu0 0
    %72 = vmatpush1.bf16.msra.mxu0 0
    %73 = vmatprep.subr.bf16.mxu0 0
    %74 = vmatpush1.bf16.msra.mxu0 0
    %75 = vmatprep.subr.bf16.mxu0 0
    %76 = vmatpush1.bf16.msra.mxu0 0
    %77 = vmatprep.subr.bf16.mxu0 0
    %78 = vmatpush1.bf16.msra.mxu0 0
    %79 = vmatprep.subr.bf16.mxu0 0
    %80 = vmatpush1.bf16.msra.mxu0 0
    %81 = vmatprep.subr.bf16.mxu0 0
    %82 = vmatpush1.bf16.msra.mxu0 0
    %83 = vmatprep.mubr.bf16.mxu0 0
    %84 = vmatmul.mubr.bf16.gmra.mrb[0].mxu0 %v49
    %v85 = vpop.f32.mrb[0].mxu0
    %v86 = vadd.f32 %v33, %v85
    %v87 = vpop.f32.mrb[0].mxu0
    %v88 = vpop.f32.mrb[0].mxu0
    %v89 = vpop.f32.mrb[0].mxu0
    %90 = vdwg.mxu0
    %v91 = vmax.f32 %v86, 0.0
    %v92 = vpack.c.bf16 %v91, %v91
    %v93 = vld [vmem:[%s3] sm:$0xf]
    %v94 = vld [vmem:[%s3 + $0x4] sm:$0xf]
    %v95 = vld [vmem:[%s3 + $0x8] sm:$0xf]
    %v96 = vld [vmem:[%s3 + $0xc] sm:$0xf]
    %v97 = vld [vmem:[%s3 + $0x10] sm:$0xf]
    %v98 = vld [vmem:[%s3 + $0x14] sm:$0xf]
    %v99 = vld [vmem:[%s3 + $0x18] sm:$0xf]
    %v100 = vld [vmem:[%s3 + $0x1c] sm:$0xf]
    %v101 = vld [vmem:[%s4] sm:$0x1]
    %v103 = vlaneseq
    %v104 = vshrl.u32 %v103, 7
    %v105 = vsub.s32 0, %v104
    %v106 = vrot.slane %v101, %v105
    %v116 = vunpack.c.l.b16 %v93
    %v117 = vunpack.c.l.b16 %v94
    %v118 = vunpack.c.l.b16 %v95
    %v119 = vunpack.c.l.b16 %v96
    %v120 = vunpack.c.l.b16 %v97
    %v121 = vunpack.c.l.b16 %v98
    %v122 = vunpack.c.l.b16 %v99
    %v123 = vunpack.c.l.b16 %v100
    %v124 = vpack.c.b16 %v117, %v116
    %v125 = vpack.c.b16 %v119, %v118
    %v126 = vpack.c.b16 %v121, %v120
    %v127 = vpack.c.b16 %v123, %v122
    %vm132 = vcmask 523264
    %v134 = vsel %vm132, %v92, 0
    %136 = vmatprep.subr.bf16.mxu0 0
    %137 = vmatpush1.bf16.msra.mxu0 %v124
    %138 = vmatprep.subr.bf16.mxu0 0
    %139 = vmatpush1.bf16.msra.mxu0 %v125
    %140 = vmatprep.subr.bf16.mxu0 0
    %141 = vmatpush1.bf16.msra.mxu0 %v126
    %142 = vmatprep.subr.bf16.mxu0 0
    %143 = vmatpush1.bf16.msra.mxu0 %v127
    %144 = vmatprep.subr.bf16.mxu0 0
    %145 = vmatpush1.bf16.msra.mxu0 0
    %146 = vmatprep.subr.bf16.mxu0 0
    %147 = vmatpush1.bf16.msra.mxu0 0
    %148 = vmatprep.subr.bf16.mxu0 0
    %149 = vmatpush1.bf16.msra.mxu0 0
    %150 = vmatprep.subr.bf16.mxu0 0
    %151 = vmatpush1.bf16.msra.mxu0 0
    %152 = vmatprep.subr.bf16.mxu0 0
    %153 = vmatpush1.bf16.msra.mxu0 0
    %154 = vmatprep.subr.bf16.mxu0 0
    %155 = vmatpush1.bf16.msra.mxu0 0
    %156 = vmatprep.subr.bf16.mxu0 0
    %157 = vmatpush1.bf16.msra.mxu0 0
    %158 = vmatprep.subr.bf16.mxu0 0
    %159 = vmatpush1.bf16.msra.mxu0 0
    %160 = vmatprep.subr.bf16.mxu0 0
    %161 = vmatpush1.bf16.msra.mxu0 0
    %162 = vmatprep.subr.bf16.mxu0 0
    %163 = vmatpush1.bf16.msra.mxu0 0
    %164 = vmatprep.subr.bf16.mxu0 0
    %165 = vmatpush1.bf16.msra.mxu0 0
    %166 = vmatprep.subr.bf16.mxu0 0
    %167 = vmatpush1.bf16.msra.mxu0 0
    %168 = vmatprep.mubr.bf16.mxu0 0
    %169 = vmatmul.mubr.bf16.gmra.mrb[0].mxu0 %v134
    %v170 = vpop.f32.mrb[0].mxu0
    %v171 = vadd.f32 %v106, %v170
    %v172 = vpop.f32.mrb[0].mxu0
    %v173 = vpop.f32.mrb[0].mxu0
    %v174 = vpop.f32.mrb[0].mxu0
    %175 = vdwg.mxu0
    %vm176 = vcmask 125952
    %v177 = vsel %vm176, %v171, -inf
    %178 = vmax.xlane.f32.xlu0 %v177
    %v179 = vpop.xlane.xlu0 %178
    %v180 = vsub.f32 %v171, %v179
    %v181 = vmul.f32 %v180, 1.442695
    %v182 = vpow.pop %v181
    %v183 = vsel %vm176, %v182, 0.0
    %184 = vadd.xlane.f32.xlu0 %v183
    %v185 = vpop.xlane.xlu0 %184
    %v186 = vrcp.pop %v185
    %v187 = vmul.f32 %v182, %v186
    %188 = vst.msk [vmem:[#allocation2] sm:$0xf] %vm176, %v187
    // Predicated region
    $region22: #{tuning_net_forward.1} parent=1 // pred_check
      _
    $region23: #{tuning_net_forward.1} parent=1 // pred_check_branch
      %190 = sbr.rel (0) target = $region25
    $region24: #{tuning_net_forward.1} parent=1 // pred_region
      %s192 = ssub.s32 64, 64
      %193 = vsyncadd [#allocation3], %s192
      %s195 = sshll.u32 [#allocation2], 4
      %s196 = int_to_ptr.vmem [resolvable:$true] %s195
      %198 = dma.vmem_to_hbm [thread:$0]  %s196, 64, %s5, [#allocation3]
    $region25: #{tuning_net_forward.1} parent=1 // pred_fallthru
      _
    // Predicated region
    $region26: #{tuning_net_forward.1} parent=1 // pred_check
      _
    $region27: #{tuning_net_forward.1} parent=1 // pred_check_branch
      %200 = sbr.rel (0) target = $region29
    $region28: #{tuning_net_forward.1} parent=1 // pred_region
      %201 = dma.done [#allocation3], 64
    $region29: #{tuning_net_forward.1} parent=1 // pred_fallthru
      _
    %202 = vsyncpa [#allocation3], 1

</llo_original>
